<compile_context>
chip_gen: v7x
topology: tpu7x:2x2x1
jax: 0.10.0
libtpu: 0.0.40
codegen_flags: <defaults>
</compile_context>

<pallas_src>
import functools

import jax
import jax.numpy as jnp
from jax.experimental import pallas as pl
from jax.experimental.pallas import tpu as pltpu


def _downsample_kernel(w_ref, b_ref, xq_ref, o_ref, slab_ref, *, C, TH, Wq, num_rt):
    """One (batch, row-tile) grid step:  out = W @ im2col(xq) + b  on the MXU.

    w_ref   : (C, 9*C)        bf16  im2col weight matrix (grid-resident)
    b_ref   : (C, 1)          f32   bias (grid-resident)
    xq_ref  : (4, C, Hq*Wq)   bf16  parity planes of the padded image
                                    (whole image per batch, resident across r)
    o_ref   : (C, TH*Wq)            output tile, flattened NCHW at width Wq
    slab_ref: (9*C, TH*Wq)    bf16  VMEM scratch: fused im2col slab
    """
    L = TH * Wq
    if num_rt == 1:
        base = 0                                   # fully static offsets
    else:
        base = pl.multiple_of(pl.program_id(1) * L, 128)   # L % 128 == 0 here

    # Fused im2col: tap (kh, kw) is a flat shift of one parity plane.
    for kh in range(3):
        for kw in range(3):
            t = kh * 3 + kw
            plane = (kh % 2) * 2 + (kw % 2)
            off = (kh // 2) * Wq + (kw // 2)
            slab_ref[pl.ds(t * C, C), :] = xq_ref[plane, :, pl.ds(base + off, L)]

    acc = jnp.dot(w_ref[...], slab_ref[...], preferred_element_type=jnp.float32)
    o_ref[...] = (acc + b_ref[...]).astype(o_ref.dtype)


def _tile_budget_bytes():
    # Bigger row tiles on 128 MiB chips (v5e/v6e), conservative on v7x (64 MiB).
    try:
        vmem = pltpu.get_tpu_info().vmem_capacity_bytes
    except Exception:
        vmem = 64 << 20
    return (14 << 20) if vmem >= (100 << 20) else (6 << 20)


def _pick_row_tile(Ho, Wq, C, N, tile_budget_bytes):
    """Largest legal output-row tile.  Legal = TH == Ho (block equals full array
    dim) or TH*Wq is a multiple of 128 (lane-aligned out/slab blocks)."""
    cands = [Ho] + [th for th in range(Ho - 1, 0, -1)
                    if Ho % th == 0 and (th * Wq) % 128 == 0]

    def slab_bytes(th):
        return 9 * C * th * Wq * 2  # bf16

    th = next((t for t in cands if slab_bytes(t) <= tile_budget_bytes), cands[-1])
    # v7x shards "parallel" grid axes over 2 TensorCores: guarantee >=2 grid
    # points when the batch alone does not provide them.
    if N * (Ho // th) < 2:
        for t in cands:
            if (Ho // t) >= 2 and slab_bytes(t) <= tile_budget_bytes:
                th = t
                break
    return th


def _vmem_limit_bytes(C, Hq, Wq, TH, out_itemsize):
    # Double-buffered inputs/outputs + single slab scratch + headroom.
    w = 2 * (C * 9 * C * 2)
    b = 2 * (max(C, 8) * 128 * 4)
    xq = 2 * (4 * C * Hq * Wq * 2)
    out = 2 * (C * TH * Wq * out_itemsize)
    slab = 9 * C * TH * Wq * 2
    need = w + b + xq + out + slab
    need = need + need // 4 + (4 << 20)          # compiler-scratch headroom
    return int(min(max(need, 16 << 20), 100 << 20))


def downsample_forward(x_nchw, weight, bias):
    """Forward of Downsample: nn.Conv2d(C, C, 3, stride=2, padding=1).

    x_nchw: (N, C, H, W), weight: (C, C, 3, 3), bias: (C,)
    returns (N, C, Ho, Wo) with Ho = floor((H-1)/2)+1, Wo = floor((W-1)/2)+1.
    """
    N, C, H, W = x_nchw.shape
    Ho = (H - 1) // 2 + 1
    Wo = (W - 1) // 2 + 1
    Hq = Ho + 2          # plane rows: +1 for the kh=2 tap, +1 spare so flat shifts stay in-bounds
    Wq = Wo + 1          # plane / wide-output width (extra column cropped at the end)

    # ---- XLA glue, all in bf16: pad once, parity(space-to-depth)-split once. ----
    xb = x_nchw.astype(jnp.bfloat16)             # cast BEFORE pad/split
    pad_b = 2 * Hq - H - 1
    pad_r = 2 * Wq - W - 1
    xpad = jnp.pad(xb, ((0, 0), (0, 0), (1, pad_b), (1, pad_r)))
    # xq[n, 2a+b, c, i*Wq + j] = xpad[n, c, 2i+a, 2j+b]
    xq = (xpad.reshape(N, C, Hq, 2, Wq, 2)
              .transpose(0, 3, 5, 1, 2, 4)
              .reshape(N, 4, C, Hq * Wq))

    # Weight (Cout, Cin, kh, kw) -> (Cout, (kh, kw, Cin)), matching the slab's K order.
    wmat = jnp.transpose(weight, (0, 2, 3, 1)).reshape(C, 9 * C).astype(jnp.bfloat16)
    b2 = bias.reshape(C, 1).astype(jnp.float32)

    TH = _pick_row_tile(Ho, Wq, C, N, _tile_budget_bytes())
    assert Ho % TH == 0
    assert TH == Ho or (TH * Wq) % 128 == 0
    num_rt = Ho // TH
    L = TH * Wq
    # TODO(synk): for very large C (>= ~1024) add a Cout grid axis so only a
    # weight slice is VMEM-resident (v7x 64 MiB), and for very large feature
    # maps switch the parity planes to an overlapping row-tiled input pipeline
    # instead of keeping the whole per-batch image resident.

    kernel = functools.partial(_downsample_kernel, C=C, TH=TH, Wq=Wq, num_rt=num_rt)

    out_wide = pl.pallas_call(
        kernel,
        out_shape=jax.ShapeDtypeStruct((N, C, Ho * Wq), x_nchw.dtype),
        grid_spec=pltpu.PrefetchScalarGridSpec(
            num_scalar_prefetch=0,
            grid=(N, num_rt),
            in_specs=[
                pl.BlockSpec((C, 9 * C), lambda n, r: (0, 0)),                   # weights
                pl.BlockSpec((C, 1), lambda n, r: (0, 0)),                       # bias
                pl.BlockSpec((None, 4, C, Hq * Wq), lambda n, r: (n, 0, 0, 0)),  # parity planes
            ],
            out_specs=pl.BlockSpec((None, C, L), lambda n, r: (n, 0, r)),
            scratch_shapes=[pltpu.VMEM((9 * C, L), jnp.bfloat16)],
        ),
        compiler_params=pltpu.CompilerParams(
            dimension_semantics=("parallel", "parallel"),
            vmem_limit_bytes=_vmem_limit_bytes(C, Hq, Wq, TH, x_nchw.dtype.itemsize),
        ),
    )(wmat, b2, xq)

    # Crop the extra padding column (j == Wo) that was computed alongside the
    # real output to keep all in-kernel accesses contiguous.
    return out_wide.reshape(N, C, Ho, Wq)[:, :, :, :Wo]


downsample_forward = jax.jit(downsample_forward)


if __name__ == "__main__":
    key = jax.random.PRNGKey(0)
    k1, k2, k3 = jax.random.split(key, 3)

    N, C, H, W = 2, 4, 16, 16
    x = jax.random.normal(k1, (N, C, H, W), dtype=jnp.float32)
    # Deterministic synthetic parameters (same shapes as nn.Conv2d(C, C, 3, 2, 1)).
    weight = jax.random.normal(k2, (C, C, 3, 3), dtype=jnp.float32) * 0.1
    bias = jax.random.normal(k3, (C,), dtype=jnp.float32) * 0.1

    out = jax.block_until_ready(downsample_forward(x, weight, bias))
    assert out.shape == (N, C, H // 2, W // 2), out.shape

    # Reference 1 (tight): same bf16 input/weight rounding + f32 accumulation.
    xb = x.astype(jnp.bfloat16).astype(jnp.float32)
    wb = weight.astype(jnp.bfloat16).astype(jnp.float32)
    ref_bf16 = jax.lax.conv_general_dilated(
        xb, wb, window_strides=(2, 2), padding=((1, 1), (1, 1)),
        dimension_numbers=("NCHW", "OIHW", "NCHW"),
    ) + bias.reshape(1, C, 1, 1)
    # Reference 2 (loose): full-f32 conv bounds the deliberate bf16 cast error.
    ref_f32 = jax.lax.conv_general_dilated(
        x, weight, window_strides=(2, 2), padding=((1, 1), (1, 1)),
        dimension_numbers=("NCHW", "OIHW", "NCHW"),
    ) + bias.reshape(1, C, 1, 1)

    err_tight = float(jnp.max(jnp.abs(out - ref_bf16)))
    err_loose = float(jnp.max(jnp.abs(out - ref_f32)))
    assert err_tight < 2e-3, err_tight
    assert err_loose < 1e-1, err_loose
    print("KERNEL_OK")
</pallas_src>

<mosaic_0001>
module attributes {stable_mosaic.version = 11 : i64} {
  func.func @_downsample_kernel(%arg0: i32, %arg1: i32, %arg2: memref<4x36xbf16, #tpu.memory_space<vmem>>, %arg3: memref<4x1xf32, #tpu.memory_space<vmem>>, %arg4: memref<1x4x4x90xbf16, #tpu.memory_space<vmem>>, %arg5: memref<1x4x72xf32, #tpu.memory_space<vmem>>, %arg6: memref<36x72xbf16, #tpu.memory_space<vmem>>) attributes {dimension_semantics = [#tpu.dimension_semantics<parallel>, #tpu.dimension_semantics<parallel>], iteration_bounds = array<i64: 2, 1>, scalar_prefetch = 0 : i64, scratch_operands = 1 : i64, tpu.core_type = #tpu.core_type<tc>, window_params = [{pipeline_mode = #tpu.pipeline_mode<synchronous>, transform_indices = @transform_0, window_bounds = array<i64: 4, 36>}, {pipeline_mode = #tpu.pipeline_mode<synchronous>, transform_indices = @transform_1, window_bounds = array<i64: 4, 1>}, {transform_indices = @transform_2, window_bounds = array<i64: 1, 4, 4, 90>}, {transform_indices = @transform_3, window_bounds = array<i64: 1, 4, 72>}]} {
    %c0 = arith.constant 0 : index
    %c0_0 = arith.constant 0 : index
    %c0_1 = arith.constant 0 : index
    %c0_2 = arith.constant 0 : index
    %0 = vector.load %arg4[%c0, %c0_0, %c0_1, %c0_2] : memref<1x4x4x90xbf16, #tpu.memory_space<vmem>>, vector<1x1x4x72xbf16>
    %1 = vector.shape_cast %0 : vector<1x1x4x72xbf16> to vector<4x72xbf16>
    %c0_3 = arith.constant 0 : index
    %c0_4 = arith.constant 0 : index
    %2 = vector.load %arg6[%c0_3, %c0_4] : memref<36x72xbf16, #tpu.memory_space<vmem>>, vector<4x72xbf16>
    tpu.vector_store %arg6[%c0_3, %c0_4], %1 {strides = array<i32>} : memref<36x72xbf16, #tpu.memory_space<vmem>>, vector<4x72xbf16>,
    %c0_5 = arith.constant 0 : index
    %c1 = arith.constant 1 : index
    %c0_6 = arith.constant 0 : index
    %c0_7 = arith.constant 0 : index
    %3 = vector.load %arg4[%c0_5, %c1, %c0_6, %c0_7] : memref<1x4x4x90xbf16, #tpu.memory_space<vmem>>, vector<1x1x4x72xbf16>
    %4 = vector.shape_cast %3 : vector<1x1x4x72xbf16> to vector<4x72xbf16>
    %c4 = arith.constant 4 : index
    %c0_8 = arith.constant 0 : index
    %5 = vector.load %arg6[%c4, %c0_8] : memref<36x72xbf16, #tpu.memory_space<vmem>>, vector<4x72xbf16>
    tpu.vector_store %arg6[%c4, %c0_8], %4 {strides = array<i32>} : memref<36x72xbf16, #tpu.memory_space<vmem>>, vector<4x72xbf16>,
    %c0_9 = arith.constant 0 : index
    %c0_10 = arith.constant 0 : index
    %c0_11 = arith.constant 0 : index
    %c1_12 = arith.constant 1 : index
    %6 = vector.load %arg4[%c0_9, %c0_10, %c0_11, %c1_12] : memref<1x4x4x90xbf16, #tpu.memory_space<vmem>>, vector<1x1x4x72xbf16>
    %7 = vector.shape_cast %6 : vector<1x1x4x72xbf16> to vector<4x72xbf16>
    %c8 = arith.constant 8 : index
    %c0_13 = arith.constant 0 : index
    %8 = vector.load %arg6[%c8, %c0_13] : memref<36x72xbf16, #tpu.memory_space<vmem>>, vector<4x72xbf16>
    tpu.vector_store %arg6[%c8, %c0_13], %7 {strides = array<i32>} : memref<36x72xbf16, #tpu.memory_space<vmem>>, vector<4x72xbf16>,
    %c0_14 = arith.constant 0 : index
    %c2 = arith.constant 2 : index
    %c0_15 = arith.constant 0 : index
    %c0_16 = arith.constant 0 : index
    %9 = vector.load %arg4[%c0_14, %c2, %c0_15, %c0_16] : memref<1x4x4x90xbf16, #tpu.memory_space<vmem>>, vector<1x1x4x72xbf16>
    %10 = vector.shape_cast %9 : vector<1x1x4x72xbf16> to vector<4x72xbf16>
    %c12 = arith.constant 12 : index
    %c0_17 = arith.constant 0 : index
    %11 = vector.load %arg6[%c12, %c0_17] : memref<36x72xbf16, #tpu.memory_space<vmem>>, vector<4x72xbf16>
    tpu.vector_store %arg6[%c12, %c0_17], %10 {strides = array<i32>} : memref<36x72xbf16, #tpu.memory_space<vmem>>, vector<4x72xbf16>,
    %c0_18 = arith.constant 0 : index
    %c3 = arith.constant 3 : index
    %c0_19 = arith.constant 0 : index
    %c0_20 = arith.constant 0 : index
    %12 = vector.load %arg4[%c0_18, %c3, %c0_19, %c0_20] : memref<1x4x4x90xbf16, #tpu.memory_space<vmem>>, vector<1x1x4x72xbf16>
    %13 = vector.shape_cast %12 : vector<1x1x4x72xbf16> to vector<4x72xbf16>
    %c16 = arith.constant 16 : index
    %c0_21 = arith.constant 0 : index
    %14 = vector.load %arg6[%c16, %c0_21] : memref<36x72xbf16, #tpu.memory_space<vmem>>, vector<4x72xbf16>
    tpu.vector_store %arg6[%c16, %c0_21], %13 {strides = array<i32>} : memref<36x72xbf16, #tpu.memory_space<vmem>>, vector<4x72xbf16>,
    %c0_22 = arith.constant 0 : index
    %c2_23 = arith.constant 2 : index
    %c0_24 = arith.constant 0 : index
    %c1_25 = arith.constant 1 : index
    %15 = vector.load %arg4[%c0_22, %c2_23, %c0_24, %c1_25] : memref<1x4x4x90xbf16, #tpu.memory_space<vmem>>, vector<1x1x4x72xbf16>
    %16 = vector.shape_cast %15 : vector<1x1x4x72xbf16> to vector<4x72xbf16>
    %c20 = arith.constant 20 : index
    %c0_26 = arith.constant 0 : index
    %17 = vector.load %arg6[%c20, %c0_26] : memref<36x72xbf16, #tpu.memory_space<vmem>>, vector<4x72xbf16>
    tpu.vector_store %arg6[%c20, %c0_26], %16 {strides = array<i32>} : memref<36x72xbf16, #tpu.memory_space<vmem>>, vector<4x72xbf16>,
    %c0_27 = arith.constant 0 : index
    %c0_28 = arith.constant 0 : index
    %c0_29 = arith.constant 0 : index
    %c9 = arith.constant 9 : index
    %18 = vector.load %arg4[%c0_27, %c0_28, %c0_29, %c9] : memref<1x4x4x90xbf16, #tpu.memory_space<vmem>>, vector<1x1x4x72xbf16>
    %19 = vector.shape_cast %18 : vector<1x1x4x72xbf16> to vector<4x72xbf16>
    %c24 = arith.constant 24 : index
    %c0_30 = arith.constant 0 : index
    %20 = vector.load %arg6[%c24, %c0_30] : memref<36x72xbf16, #tpu.memory_space<vmem>>, vector<4x72xbf16>
    tpu.vector_store %arg6[%c24, %c0_30], %19 {strides = array<i32>} : memref<36x72xbf16, #tpu.memory_space<vmem>>, vector<4x72xbf16>,
    %c0_31 = arith.constant 0 : index
    %c1_32 = arith.constant 1 : index
    %c0_33 = arith.constant 0 : index
    %c9_34 = arith.constant 9 : index
    %21 = vector.load %arg4[%c0_31, %c1_32, %c0_33, %c9_34] : memref<1x4x4x90xbf16, #tpu.memory_space<vmem>>, vector<1x1x4x72xbf16>
    %22 = vector.shape_cast %21 : vector<1x1x4x72xbf16> to vector<4x72xbf16>
    %c28 = arith.constant 28 : index
    %c0_35 = arith.constant 0 : index
    %23 = vector.load %arg6[%c28, %c0_35] : memref<36x72xbf16, #tpu.memory_space<vmem>>, vector<4x72xbf16>
    tpu.vector_store %arg6[%c28, %c0_35], %22 {strides = array<i32>} : memref<36x72xbf16, #tpu.memory_space<vmem>>, vector<4x72xbf16>,
    %c0_36 = arith.constant 0 : index
    %c0_37 = arith.constant 0 : index
    %c0_38 = arith.constant 0 : index
    %c10 = arith.constant 10 : index
    %24 = vector.load %arg4[%c0_36, %c0_37, %c0_38, %c10] : memref<1x4x4x90xbf16, #tpu.memory_space<vmem>>, vector<1x1x4x72xbf16>
    %25 = vector.shape_cast %24 : vector<1x1x4x72xbf16> to vector<4x72xbf16>
    %c32 = arith.constant 32 : index
    %c0_39 = arith.constant 0 : index
    %26 = vector.load %arg6[%c32, %c0_39] : memref<36x72xbf16, #tpu.memory_space<vmem>>, vector<4x72xbf16>
    tpu.vector_store %arg6[%c32, %c0_39], %25 {strides = array<i32>} : memref<36x72xbf16, #tpu.memory_space<vmem>>, vector<4x72xbf16>,
    %c0_40 = arith.constant 0 : index
    %c0_41 = arith.constant 0 : index
    %27 = vector.load %arg2[%c0_40, %c0_41] : memref<4x36xbf16, #tpu.memory_space<vmem>>, vector<4x36xbf16>
    %c0_42 = arith.constant 0 : index
    %c0_43 = arith.constant 0 : index
    %28 = vector.load %arg6[%c0_42, %c0_43] : memref<36x72xbf16, #tpu.memory_space<vmem>>, vector<36x72xbf16>
    %cst = arith.constant dense<0.000000e+00> : vector<4x72xf32>
    %29 = tpu.matmul %27, %28, %cst {dimension_numbers = #tpu.dot_dimension_numbers<[1], [0], [0], [1], [0, 0, 1, 1], [], []>} : vector<4x36xbf16>, vector<36x72xbf16>, vector<4x72xf32> -> vector<4x72xf32>
    %c0_44 = arith.constant 0 : index
    %c0_45 = arith.constant 0 : index
    %30 = vector.load %arg3[%c0_44, %c0_45] : memref<4x1xf32, #tpu.memory_space<vmem>>, vector<4x1xf32>
    %31 = vector.broadcast %30 : vector<4x1xf32> to vector<4x72xf32>
    %32 = arith.addf %29, %31 : vector<4x72xf32>
    %c0_46 = arith.constant 0 : index
    %c0_47 = arith.constant 0 : index
    %c0_48 = arith.constant 0 : index
    %33 = vector.load %arg5[%c0_46, %c0_47, %c0_48] : memref<1x4x72xf32, #tpu.memory_space<vmem>>, vector<1x4x72xf32>
    %34 = vector.shape_cast %33 : vector<1x4x72xf32> to vector<4x72xf32>
    %35 = vector.shape_cast %32 : vector<4x72xf32> to vector<1x4x72xf32>
    tpu.vector_store %arg5[%c0_46, %c0_47, %c0_48], %35 {strides = array<i32>} : memref<1x4x72xf32, #tpu.memory_space<vmem>>, vector<1x4x72xf32>,
    return
  }
  func.func @transform_0(%arg0: i32, %arg1: i32) -> (i32, i32) {
    %c0_i32 = arith.constant 0 : i32
    %c0_i32_0 = arith.constant 0 : i32
    %c0_i32_1 = arith.constant 0 : i32
    return %c0_i32, %c0_i32_0 : i32, i32
  }
  func.func @transform_1(%arg0: i32, %arg1: i32) -> (i32, i32) {
    %c0_i32 = arith.constant 0 : i32
    %c0_i32_0 = arith.constant 0 : i32
    %c0_i32_1 = arith.constant 0 : i32
    return %c0_i32, %c0_i32_0 : i32, i32
  }
  func.func @transform_2(%arg0: i32, %arg1: i32) -> (i32, i32, i32, i32) {
    %c0_i32 = arith.constant 0 : i32
    %c0_i32_0 = arith.constant 0 : i32
    %c0_i32_1 = arith.constant 0 : i32
    %c0_i32_2 = arith.constant 0 : i32
    return %arg0, %c0_i32, %c0_i32_0, %c0_i32_1 : i32, i32, i32, i32
  }
  func.func @transform_3(%arg0: i32, %arg1: i32) -> (i32, i32, i32) {
    %c0_i32 = arith.constant 0 : i32
    %c0_i32_0 = arith.constant 0 : i32
    return %arg0, %c0_i32, %arg1 : i32, i32, i32
  }
}

</mosaic_0001>

<llo_original>
// kernel: downsample_forward.1
$region0: #{downsample_forward.1}
  #allocation0 [shape = 'u32[]', space=smem, size = 0x4, offset = 0x4, fixed_abs, tag = 'smem constant byte address 0x4 - core index']
  #allocation1 [shape = 'u32[144,128]{1,0:T(1,128)}', space=vmem, size = 0x12000, scoped, tag = 'internal scratch']
  #allocation2 [shape = 'bf16[36,72]{1,0:T(8,128)(2,1)}', space=vmem, size = 0x2800, scoped, tag = 'scratch operand']
  %s0 = inlined_call_operand.vmem [shape: bf16[4,36], index: 0, kind: input, shape index: {}]
  %s1 = inlined_call_operand.vmem [shape: f32[4,1], index: 1, kind: input, shape index: {}]
  %s2 = inlined_call_operand.vmem [shape: bf16[2,4,4,90], index: 2, kind: input, shape index: {}]
  %s3 = inlined_call_operand.vmem [shape: f32[2,4,72], index: 3, kind: output, shape index: {}]
  %s4 = sld [smem:[#allocation0]]
  $region45: #{downsample_forward.1} parent=0
    _
  %s6 = ssub.s32 1, %s4
  %s7 = scalar_select 0, %s6, %s4
  loop: start=0, step=1, limit=4
  $region2: #{downsample_forward.1} parent=0 // loop_pre_header
    _
  $region3: #{downsample_forward.1} parent=0 // loop_header
    %s9 = sphi 0, %s13
    %p10 = scmp.ge.s32.totalorder %s9, 4
    %s16 = sphi 0, %s28
    %s17 = sphi 0, %s24
    %s18 = sphi 0, %s16
    %s19 = sphi 0, %s17
    %s20 = sphi 0, %s18
    %s21 = sphi 0, %s19
    %s29 = sphi 0, %s29
    %s31 = sphi 0, %s29
    %s32 = sphi 0, %s31
    %s46 = sphi 0, %s32
    %s50 = sphi 0, %s50
    %s52 = sphi 0, %s50
    %s53 = sphi 0, %s52
    %s67 = sphi 0, %s53
    %s73 = sphi 0, %s75
    %s76 = sphi 0, %s73
    %s77 = sphi 0, %s76
    %s93 = sphi 0, %s77
    %s101 = sphi 0, %s103
    %s104 = sphi 0, %s101
    %s105 = sphi 0, %s104
    %s121 = sphi 0, %s105
  $region4: #{downsample_forward.1} parent=0 // loop_header_branch
    %12 = sbr.rel (%p10) target = $region8
  $region5: #{downsample_forward.1} parent=0 // loop_body
    %s14 = ssub.s32 %s9, 1
    %s15 = ssub.s32 %s9, 2
    %s22 = sadd.s32 1, %s17
    %p23 = scmp.ge.s32.totalorder %s22, 1
    %s24 = scalar_select %p23, 0, %s22
    %s25 = sadd.s32 1, %s16
    %s26 = scalar_select %p23, %s25, %s16
    %p27 = scmp.ge.s32.totalorder %s26, 2
    %s28 = scalar_select %p27, 0, %s26
    %s30 = sadd.s32 %s29, 1
    %p33 = scmp.eq.s32.totalorder %s9, 1
    %p34 = scmp.ne.s32.totalorder %s29, %s31
    %p35 = scmp.eq.s32.totalorder %s9, 0
    %p36 = por %p34, %p35
    %p37 = scmp.ne.s32.totalorder %s29, %s31
    %p38 = scmp.eq.s32.totalorder %s14, 1
    %p39 = por %p37, %p38
    %p40 = scmp.ne.s32.totalorder %s31, %s32
    %p41 = scmp.eq.s32.totalorder %s14, 0
    %p42 = por %p40, %p41
    %p43 = scmp.ne.s32.totalorder %s31, %s32
    %p44 = scmp.eq.s32.totalorder %s15, 1
    %p45 = por %p43, %p44
    %p47 = scmp.ne.s32.totalorder %s32, %s46
    %p48 = scmp.eq.s32.totalorder %s15, 0
    %p49 = por %p47, %p48
    %s51 = sadd.s32 %s50, 1
    %p54 = scmp.eq.s32.totalorder %s9, 1
    %p55 = scmp.ne.s32.totalorder %s50, %s52
    %p56 = scmp.eq.s32.totalorder %s9, 0
    %p57 = por %p55, %p56
    %p58 = scmp.ne.s32.totalorder %s50, %s52
    %p59 = scmp.eq.s32.totalorder %s14, 1
    %p60 = por %p58, %p59
    %p61 = scmp.ne.s32.totalorder %s52, %s53
    %p62 = scmp.eq.s32.totalorder %s14, 0
    %p63 = por %p61, %p62
    %p64 = scmp.ne.s32.totalorder %s52, %s53
    %p65 = scmp.eq.s32.totalorder %s15, 1
    %p66 = por %p64, %p65
    %p68 = scmp.ne.s32.totalorder %s53, %s67
    %p69 = scmp.eq.s32.totalorder %s15, 0
    %p70 = por %p68, %p69
    %s71 = ssub.s32 %s16, %s28
    %p72 = scmp.eq.s32.totalorder %s71, 0
    %s74 = sadd.s32 %s73, 1
    %s75 = scalar_select %p72, %s73, %s74
    %p78 = pneg %p72
    %p79 = scmp.eq.s32.totalorder %s9, 1
    %p80 = por %p78, %p79
    %p81 = scmp.ne.s32.totalorder %s73, %s76
    %p82 = scmp.eq.s32.totalorder %s9, 0
    %p83 = por %p81, %p82
    %p84 = scmp.ne.s32.totalorder %s73, %s76
    %p85 = scmp.eq.s32.totalorder %s14, 1
    %p86 = por %p84, %p85
    %p87 = scmp.ne.s32.totalorder %s76, %s77
    %p88 = scmp.eq.s32.totalorder %s14, 0
    %p89 = por %p87, %p88
    %p90 = scmp.ne.s32.totalorder %s76, %s77
    %p91 = scmp.eq.s32.totalorder %s15, 1
    %p92 = por %p90, %p91
    %p94 = scmp.ne.s32.totalorder %s77, %s93
    %p95 = scmp.eq.s32.totalorder %s15, 0
    %p96 = por %p94, %p95
    %s97 = ssub.s32 %s16, %s28
    %s98 = ssub.s32 %s17, %s24
    %s99 = sor.u32 %s97, %s98
    %p100 = scmp.eq.s32.totalorder %s99, 0
    %s102 = sadd.s32 %s101, 1
    %s103 = scalar_select %p100, %s101, %s102
    %p106 = pneg %p100
    %p107 = scmp.eq.s32.totalorder %s9, 1
    %p108 = por %p106, %p107
    %p109 = scmp.ne.s32.totalorder %s101, %s104
    %p110 = scmp.eq.s32.totalorder %s9, 0
    %p111 = por %p109, %p110
    %p112 = scmp.ne.s32.totalorder %s101, %s104
    %p113 = scmp.eq.s32.totalorder %s14, 1
    %p114 = por %p112, %p113
    %p115 = scmp.ne.s32.totalorder %s104, %s105
    %p116 = scmp.eq.s32.totalorder %s14, 0
    %p117 = por %p115, %p116
    %p118 = scmp.ne.s32.totalorder %s104, %s105
    %p119 = scmp.eq.s32.totalorder %s15, 1
    %p120 = por %p118, %p119
    %p122 = scmp.ne.s32.totalorder %s105, %s121
    %p123 = scmp.eq.s32.totalorder %s15, 0
    %p124 = por %p122, %p123
    %p125 = scmp.le.s32.totalorder 1, %s9
    %p126 = scmp.lt.s32.totalorder %s9, 3
    %p127 = pnand %p125, %p126
    %p128 = pneg %p127
    // Predicated region
    $region9: #{downsample_forward.1} parent=5 // pred_check
      _
    $region10: #{downsample_forward.1} parent=5 // pred_check_branch
      %130 = sbr.rel (%p127) target = $region12
    $region11: #{downsample_forward.1} parent=5 // pred_region
      %s131 = ssub.s32 %s9, 1
      // Predicated region
      $region13: #{downsample_forward.1} parent=11 // pred_check
        %p132 = pneg %p42
      $region14: #{downsample_forward.1} parent=11 // pred_check_branch
        %134 = sbr.rel (%p132) target = $region16
      $region15: #{downsample_forward.1} parent=11 // pred_region
        _
      $region16: #{downsample_forward.1} parent=11 // pred_fallthru
        _
      // Predicated region
      $region17: #{downsample_forward.1} parent=11 // pred_check
        %p135 = pneg %p63
      $region18: #{downsample_forward.1} parent=11 // pred_check_branch
        %137 = sbr.rel (%p135) target = $region20
      $region19: #{downsample_forward.1} parent=11 // pred_region
        _
      $region20: #{downsample_forward.1} parent=11 // pred_fallthru
        _
    $region12: #{downsample_forward.1} parent=5 // pred_fallthru
      _
    %p138 = scmp.lt.s32.totalorder %s9, 2
    // Predicated region
    $region21: #{downsample_forward.1} parent=5 // pred_check
      %p139 = pneg %p138
    $region22: #{downsample_forward.1} parent=5 // pred_check_branch
      %141 = sbr.rel (%p139) target = $region24
    $region23: #{downsample_forward.1} parent=5 // pred_region
      // Predicated region
      $region25: #{downsample_forward.1} parent=23 // pred_check
        %p142 = pneg %p83
      $region26: #{downsample_forward.1} parent=23 // pred_check_branch
        %144 = sbr.rel (%p142) target = $region28
      $region27: #{downsample_forward.1} parent=23 // pred_region
        %p145 = scmp.lt.s32.totalorder %s16, 1
        %s146 = scalar_select %p145, %s16, 1
        %s147 = smul.addr %s146, 4
        %s148 = smul.addr %s147, 2
        %s149 = scalar_lea.vmem %s2, %s148
      $region28: #{downsample_forward.1} parent=23 // pred_fallthru
        _
    $region24: #{downsample_forward.1} parent=5 // pred_fallthru
      _
    %p150 = scmp.le.s32.totalorder 1, %s9
    %p151 = scmp.lt.s32.totalorder %s9, 3
    %p152 = pnand %p150, %p151
    %p153 = pneg %p152
    // Predicated region
    $region29: #{downsample_forward.1} parent=5 // pred_check
      _
    $region30: #{downsample_forward.1} parent=5 // pred_check_branch
      %155 = sbr.rel (%p152) target = $region32
    $region31: #{downsample_forward.1} parent=5 // pred_region
      %s156 = ssub.s32 %s9, 1
      %p157 = pneg %p42
      %p158 = pneg %p39
      %p159 = pneg %p63
      %p160 = pneg %p60
      %p161 = scmp.lt.s32.totalorder %s18, 1
      %s162 = scalar_select %p161, %s18, 1
      %s163 = smul.addr %s162, 4
      %s164 = smul.addr %s163, 2
      %s165 = scalar_lea.vmem %s2, %s164
      %p166 = pneg %p89
      %p167 = pneg %p86
      %p168 = pneg %p117
      %p169 = pneg %p114
      %p170 = scmp.lt.s32.totalorder %s18, 1
      %s171 = scalar_select %p170, %s18, 1
      %p172 = scmp.lt.s32.totalorder %s19, 0
      %s173 = scalar_select %p172, %s19, 0
      %s174 = sadd.s32 %s173, %s171
      %s175 = smul.addr %s174, 4
      %s176 = scalar_lea.vmem %s3, %s175
      %p177 = scmp.lt.s32.totalorder %s18, 1
      %s178 = scalar_select %p177, %s18, 1
      %s179 = smul.addr %s178, 4
      %s180 = smul.addr %s179, 2
      %s181 = scalar_lea.vmem %s2, %s180
      %p182 = scmp.lt.s32.totalorder %s18, 1
      %s183 = scalar_select %p182, %s18, 1
      %p184 = scmp.lt.s32.totalorder %s19, 0
      %s185 = scalar_select %p184, %s19, 0
      %s186 = sadd.s32 %s185, %s183
      %s187 = smul.addr %s186, 4
      %s188 = scalar_lea.vmem %s3, %s187
      %v190 = vld [vmem:[%s181] sm:$0x3]
      %vm191 = vcmask 582656
      %192 = vst.msk [vmem:[#allocation2] sm:$0x3] %vm191, %v190
      %s193 = scalar_lea.vmem %s181, 2
      %v194 = vld [vmem:[%s193] sm:$0x3]
      %v196 = vcombine.low %v194, %v194
      %v198 = vunpack.c.l.s4 1983009808
      %v199 = vunpack.c.0.s8 %v198
      %v200 = vlaneseq
      %v201 = vshrl.u32 %v200, 7
      %v202 = vsub.s32 %v199, %v201
      %v203 = vrot.slane %v196, %v202
      %vm205 = vcmask 584706
      %206 = vst.msk [vmem:[#allocation2] sm:$0xc] %vm205, %v203
      %v207 = vld [vmem:[%s181] sm:$0x3]
      %v210 = vunpack.c.l.s4 1983009808
      %v211 = vunpack.c.0.s8 %v210
      %v212 = vlaneseq
      %v213 = vshrl.u32 %v212, 7
      %v214 = vsub.s32 %v211, %v213
      %v215 = vrot.slane %v207, %v214
      %216 = vrot.lane.b32.xlu0 %v215, 127
      %v217 = vpop.permute.xlu0 %216
      %219 = vst.msk [vmem:[#allocation2 + $0x4] sm:$0x3] %vm191, %v217
      %s220 = scalar_lea.vmem %s181, 4
      %v221 = vld [vmem:[%s220] sm:$0x3]
      %v223 = vcombine.low %v221, %v221
      %v225 = vunpack.c.l.s4 1983009808
      %v226 = vunpack.c.0.s8 %v225
      %v227 = vlaneseq
      %v228 = vshrl.u32 %v227, 7
      %v229 = vsub.s32 %v226, %v228
      %v230 = vrot.slane %v223, %v229
      %232 = vst.msk [vmem:[#allocation2 + $0x4] sm:$0xc] %vm205, %v230
      %s233 = scalar_lea.vmem %s181, 6
      %v234 = vld [vmem:[%s233] sm:$0x3]
      %235 = vst.msk [vmem:[#allocation2 + $0x8] sm:$0x3] %vm191, %v234
      %v236 = vld [vmem:[%s220] sm:$0x3]
      %v238 = vcombine.low %v236, %v236
      %v240 = vunpack.c.l.s4 1983009808
      %v241 = vunpack.c.0.s8 %v240
      %v242 = vlaneseq
      %v243 = vshrl.u32 %v242, 7
      %v244 = vsub.s32 %v241, %v243
      %v245 = vrot.slane %v238, %v244
      %246 = vrot.lane.b32.xlu0 %v245, 127
      %v247 = vpop.permute.xlu0 %246
      %249 = vst.msk [vmem:[#allocation2 + $0x8] sm:$0xc] %vm205, %v247
      %v250 = vld [vmem:[%s181] sm:$0x3]
      %v253 = vunpack.c.l.s4 1983009808
      %v254 = vunpack.c.0.s8 %v253
      %v255 = vlaneseq
      %v256 = vshrl.u32 %v255, 7
      %v257 = vsub.s32 %v254, %v256
      %v258 = vrot.slane %v250, %v257
      %259 = vrot.lane.b32.xlu0 %v258, 119
      %v260 = vpop.permute.xlu0 %259
      %262 = vst.msk [vmem:[#allocation2 + $0xc] sm:$0x3] %vm191, %v260
      %v263 = vld [vmem:[%s193] sm:$0x3]
      %v265 = vcombine.low %v263, %v263
      %v267 = vunpack.c.l.s4 1983009808
      %v268 = vunpack.c.0.s8 %v267
      %v269 = vlaneseq
      %v270 = vshrl.u32 %v269, 7
      %v271 = vsub.s32 %v268, %v270
      %v272 = vrot.slane %v265, %v271
      %273 = vrot.lane.b32.xlu0 %v272, 119
      %v274 = vpop.permute.xlu0 %273
      %276 = vst.msk [vmem:[#allocation2 + $0xc] sm:$0xc] %vm205, %v274
      %v277 = vld [vmem:[%s181] sm:$0x3]
      %v280 = vunpack.c.l.s4 1983009808
      %v281 = vunpack.c.0.s8 %v280
      %v282 = vlaneseq
      %v283 = vshrl.u32 %v282, 7
      %v284 = vsub.s32 %v281, %v283
      %v285 = vrot.slane %v277, %v284
      %286 = vrot.lane.b32.xlu0 %v285, 118
      %v287 = vpop.permute.xlu0 %286
      %289 = vst.msk [vmem:[#allocation2 + $0x10] sm:$0x3] %vm191, %v287
      %v290 = vld [vmem:[%s0] sm:$0x3]
      %v291 = vld [vmem:[#allocation2] sm:$0xf]
      %v292 = vld [vmem:[#allocation2 + $0x4] sm:$0xf]
      %v293 = vld [vmem:[#allocation2 + $0x8] sm:$0xf]
      %v294 = vld [vmem:[#allocation2 + $0xc] sm:$0xf]
      %v295 = vld [vmem:[#allocation2 + $0x10] sm:$0x3]
      %v296 = vld [vmem:[%s1] sm:$0xf]
      %298 = vset.pattern.permute.xlu0 0
      %299 = vperm.xlu0 %298, %v296
      %v300 = vpop.permute.xlu0 %299
      %v307 = vunpack.c.l.b16 %v291
      %v308 = vunpack.c.l.b16 %v292
      %v309 = vunpack.c.l.b16 %v293
      %v310 = vunpack.c.l.b16 %v294
      %v311 = vunpack.c.l.b16 %v295
      %v312 = vpack.c.b16 %v308, %v307
      %v313 = vpack.c.b16 %v310, %v309
      %v314 = vpack.c.b16 %v311, %v311
      %vm317 = vcmask 293888
      %v319 = vsel %vm317, %v290, 0
      %vm321 = vcmask 1041408
      %v323 = vsel %vm321, %v314, 0
      %325 = vmatprep.subr.bf16.mxu0 0
      %326 = vmatpush1.bf16.msra.mxu0 %v312
      %327 = vmatprep.subr.bf16.mxu0 0
      %328 = vmatpush1.bf16.msra.mxu0 %v313
      %329 = vmatprep.subr.bf16.mxu0 0
      %330 = vmatpush1.bf16.msra.mxu0 %v323
      %331 = vmatprep.subr.bf16.mxu0 0
      %332 = vmatpush1.bf16.msra.mxu0 0
      %333 = vmatprep.subr.bf16.mxu0 0
      %334 = vmatpush1.bf16.msra.mxu0 0
      %335 = vmatprep.subr.bf16.mxu0 0
      %336 = vmatpush1.bf16.msra.mxu0 0
      %337 = vmatprep.subr.bf16.mxu0 0
      %338 = vmatpush1.bf16.msra.mxu0 0
      %339 = vmatprep.subr.bf16.mxu0 0
      %340 = vmatpush1.bf16.msra.mxu0 0
      %341 = vmatprep.subr.bf16.mxu0 0
      %342 = vmatpush1.bf16.msra.mxu0 0
      %343 = vmatprep.subr.bf16.mxu0 0
      %344 = vmatpush1.bf16.msra.mxu0 0
      %345 = vmatprep.subr.bf16.mxu0 0
      %346 = vmatpush1.bf16.msra.mxu0 0
      %347 = vmatprep.subr.bf16.mxu0 0
      %348 = vmatpush1.bf16.msra.mxu0 0
      %349 = vmatprep.subr.bf16.mxu0 0
      %350 = vmatpush1.bf16.msra.mxu0 0
      %351 = vmatprep.subr.bf16.mxu0 0
      %352 = vmatpush1.bf16.msra.mxu0 0
      %353 = vmatprep.subr.bf16.mxu0 0
      %354 = vmatpush1.bf16.msra.mxu0 0
      %355 = vmatprep.subr.bf16.mxu0 0
      %356 = vmatpush1.bf16.msra.mxu0 0
      %357 = vmatprep.mubr.bf16.mxu0 0
      %358 = vmatmul.mubr.bf16.gmra.mrb[0].mxu0 %v319
      %v359 = vpop.f32.mrb[0].mxu0
      %v360 = vadd.f32 %v300, %v359
      %v361 = vpop.f32.mrb[0].mxu0
      %v362 = vpop.f32.mrb[0].mxu0
      %v363 = vpop.f32.mrb[0].mxu0
      %364 = vdwg.mxu0
      %vm365 = vcmask 584704
      %366 = vst.msk [vmem:[%s188] sm:$0xf] %vm365, %v360
      %p367 = scmp.lt.s32.totalorder %s18, 1
      %s368 = scalar_select %p367, %s18, 1
      %p369 = scmp.lt.s32.totalorder %s19, 0
      %s370 = scalar_select %p369, %s19, 0
      %s371 = sadd.s32 %s370, %s368
      %s372 = smul.addr %s371, 4
      %s373 = scalar_lea.vmem %s3, %s372
      // Predicated region
      $region33: #{downsample_forward.1} parent=31 // pred_check
        %p374 = pneg %p114
      $region34: #{downsample_forward.1} parent=31 // pred_check_branch
        %376 = sbr.rel (%p374) target = $region36
      $region35: #{downsample_forward.1} parent=31 // pred_region
        _
      $region36: #{downsample_forward.1} parent=31 // pred_fallthru
        _
    $region32: #{downsample_forward.1} parent=5 // pred_fallthru
      _
    %p377 = scmp.le.s32.totalorder 2, %s9
    // Predicated region
    $region37: #{downsample_forward.1} parent=5 // pred_check
      %p378 = pneg %p377
    $region38: #{downsample_forward.1} parent=5 // pred_check_branch
      %380 = sbr.rel (%p378) target = $region40
    $region39: #{downsample_forward.1} parent=5 // pred_region
      %s381 = ssub.s32 %s9, 2
      // Predicated region
      $region41: #{downsample_forward.1} parent=39 // pred_check
        %p382 = pneg %p120
      $region42: #{downsample_forward.1} parent=39 // pred_check_branch
        %384 = sbr.rel (%p382) target = $region44
      $region43: #{downsample_forward.1} parent=39 // pred_region
        %p385 = scmp.lt.s32.totalorder %s20, 1
        %s386 = scalar_select %p385, %s20, 1
        %p387 = scmp.lt.s32.totalorder %s21, 0
        %s388 = scalar_select %p387, %s21, 0
        %s389 = sadd.s32 %s388, %s386
        %s390 = smul.addr %s389, 4
        %s391 = scalar_lea.vmem %s3, %s390
      $region44: #{downsample_forward.1} parent=39 // pred_fallthru
        _
    $region40: #{downsample_forward.1} parent=5 // pred_fallthru
      _
  $region6: #{downsample_forward.1} parent=0 // loop_footer
    %s13 = sadd.s32 1, %s9
  $region7: #{downsample_forward.1} parent=0 // loop_footer_branch
    %8 = sbr.rel target = $region3
  $region8: #{downsample_forward.1} parent=0 // loop_exit
    _

</llo_original>
